<compile_context>
chip_gen: v7x
topology: tpu7x:2x2x1
jax: 0.10.0
libtpu: 0.0.40
codegen_flags: <defaults>
</compile_context>

<pallas_src>
import jax
import jax.numpy as jnp
from jax.experimental import pallas as pl
from jax.experimental.pallas import tpu as pltpu

_LANES = 128


def _residual_conv1x1_kernel(w_ref, b_ref, x_ref, o_ref):
    # w_ref: (C*C,) f32 in SMEM, w[co*C + ci]   (1x1 conv weight)
    # b_ref: (C,)   f32 in SMEM                 (bias)
    # x_ref / o_ref: (C, TS, 128) — one batch, all channels, TS sublane rows.
    C = x_ref.shape[0]

    # Upcast once per input channel (no-op for f32; needed on v5e for bf16).
    xf = [x_ref[ci].astype(jnp.float32) for ci in range(C)]

    for co in range(C):
        # residual + bias, then C scalar*tile FMAs on the VPU (SMEM scalars
        # are free operands — no broadcast / XLU traffic).
        acc = xf[co] + b_ref[co]
        for ci in range(C):
            acc = acc + w_ref[co * C + ci] * xf[ci]
        o_ref[co] = acc.astype(o_ref.dtype)        # dense (TS,128) store


def residual_conv1x1(x_nchw, weight, bias):
    """y = conv1x1(x; weight, bias) + x, fused in one Pallas kernel.

    x_nchw: [B, C, H, W]   (any float dtype; HBM traffic stays in this dtype)
    weight: [C_out, C_in]  (C_out == C_in == C), Conv2d 1x1 kernel
    bias:   [C]
    """
    B, C, H, W = x_nchw.shape
    HW = H * W
    itemsize = jnp.dtype(x_nchw.dtype).itemsize

    # --- pixels onto (sublane, lane): view the pixel axis as rows of 128 ---
    R = -(-HW // _LANES)                      # number of 128-lane rows
    HW_pad = R * _LANES
    x3 = x_nchw.reshape(B, C, HW)             # contiguous merge, free
    if HW_pad != HW:
        x3 = jnp.pad(x3, ((0, 0), (0, 0), (0, HW_pad - HW)))
    x4 = x3.reshape(B, C, R, _LANES)          # contiguous split, free

    # --- generation-aware block sizing -------------------------------------
    try:
        info = pltpu.get_tpu_info()
        vmem_cap = int(getattr(info, "vmem_capacity_bytes", 64 * 1024 * 1024))
    except Exception:
        vmem_cap = 64 * 1024 * 1024           # conservative (v7x per-TC VMEM)

    row_bytes = C * _LANES * itemsize         # bytes per sublane-row of a block
    # ~4 live blocks (input + output, each double-buffered) + headroom.
    max_block_bytes = min(4 * 1024 * 1024, vmem_cap // 8)
    ts_cap = max(8, (max_block_bytes // row_bytes) // 8 * 8)

    if R <= ts_cap:
        ts = R                                # whole pixel axis resident per step
    else:
        ts = ts_cap
        for cand in range(ts_cap, 7, -8):     # prefer a divisor: no masked tail
            if R % cand == 0:
                ts = cand
                break

    grid_r = -(-R // ts)
    # v7x has 2 TensorCores: keep >= 2 parallel grid steps whenever possible.
    if B * grid_r < 2 and R >= 16:
        ts = max(8, ((-(-R // 2)) + 7) // 8 * 8)
        grid_r = -(-R // ts)

    block_bytes = C * ts * _LANES * itemsize
    vmem_limit = int(min(vmem_cap, max(32 * 1024 * 1024, 6 * block_bytes)))

    # Weight / bias as flat f32 scalars for SMEM.
    w_flat = weight.reshape(C * C).astype(jnp.float32)
    b_flat = bias.reshape(C).astype(jnp.float32)

    out4 = pl.pallas_call(
        _residual_conv1x1_kernel,
        out_shape=jax.ShapeDtypeStruct((B, C, R, _LANES), x_nchw.dtype),
        grid_spec=pltpu.PrefetchScalarGridSpec(
            num_scalar_prefetch=0,
            grid=(B, grid_r),
            in_specs=[
                pl.BlockSpec(memory_space=pltpu.MemorySpace.SMEM),  # weight
                pl.BlockSpec(memory_space=pltpu.MemorySpace.SMEM),  # bias
                # batch dim squeezed (None) -> kernel sees (C, TS, 128)
                pl.BlockSpec((None, C, ts, _LANES), lambda b, j: (b, 0, j, 0)),
            ],
            out_specs=pl.BlockSpec((None, C, ts, _LANES),
                                   lambda b, j: (b, 0, j, 0)),
        ),
        compiler_params=pltpu.CompilerParams(
            # Both axes independent -> shard across v7x's 2 TensorCores.
            dimension_semantics=("parallel", "parallel"),
            vmem_limit_bytes=vmem_limit,
        ),
    )(w_flat, b_flat, x4)

    out3 = out4.reshape(B, C, HW_pad)
    if HW_pad != HW:
        out3 = out3[:, :, :HW]
    return out3.reshape(B, C, H, W)


if __name__ == "__main__":
    key = jax.random.PRNGKey(0)
    kx, kw, kb = jax.random.split(key, 3)

    B, C, H, W = 2, 4, 16, 16
    x = jax.random.normal(kx, (B, C, H, W), dtype=jnp.float32)

    # Deterministic "fn" parameters (1x1 conv): weight [C_out, C_in], bias [C].
    weight = jax.random.normal(kw, (C, C), dtype=jnp.float32) * 0.1
    bias = jax.random.normal(kb, (C,), dtype=jnp.float32) * 0.1

    y = jax.block_until_ready(residual_conv1x1(x, weight, bias))

    # Reference: fn(x) + x with NCHW conv1x1 in plain JAX.
    fn_x_ref = jnp.einsum("bchw,oc->bohw", x, weight) + bias.reshape(1, C, 1, 1)
    y_ref = fn_x_ref + x
    assert y.shape == (B, C, H, W)
    assert jnp.allclose(y, y_ref, atol=1e-5, rtol=1e-5), "mismatch vs reference"

    print("KERNEL_OK")
</pallas_src>

<mosaic_0001>
module attributes {stable_mosaic.version = 11 : i64} {
  func.func @_residual_conv1x1_kernel(%arg0: i32, %arg1: i32, %arg2: memref<16xf32, #tpu.memory_space<smem>>, %arg3: memref<4xf32, #tpu.memory_space<smem>>, %arg4: memref<1x4x2x128xf32, #tpu.memory_space<vmem>>, %arg5: memref<1x4x2x128xf32, #tpu.memory_space<vmem>>) attributes {dimension_semantics = [#tpu.dimension_semantics<parallel>, #tpu.dimension_semantics<parallel>], iteration_bounds = array<i64: 2, 1>, scalar_prefetch = 0 : i64, scratch_operands = 0 : i64, tpu.core_type = #tpu.core_type<tc>, window_params = [{transform_indices = @transform_0, window_bounds = array<i64: 16>}, {transform_indices = @transform_1, window_bounds = array<i64: 4>}, {transform_indices = @transform_2, window_bounds = array<i64: 1, 4, 2, 128>}, {transform_indices = @transform_3, window_bounds = array<i64: 1, 4, 2, 128>}]} {
    %c0 = arith.constant 0 : index
    %c0_0 = arith.constant 0 : index
    %c0_1 = arith.constant 0 : index
    %c0_2 = arith.constant 0 : index
    %0 = vector.load %arg4[%c0, %c0_0, %c0_1, %c0_2] : memref<1x4x2x128xf32, #tpu.memory_space<vmem>>, vector<1x1x2x128xf32>
    %1 = vector.shape_cast %0 : vector<1x1x2x128xf32> to vector<2x128xf32>
    %c0_3 = arith.constant 0 : index
    %c1 = arith.constant 1 : index
    %c0_4 = arith.constant 0 : index
    %c0_5 = arith.constant 0 : index
    %2 = vector.load %arg4[%c0_3, %c1, %c0_4, %c0_5] : memref<1x4x2x128xf32, #tpu.memory_space<vmem>>, vector<1x1x2x128xf32>
    %3 = vector.shape_cast %2 : vector<1x1x2x128xf32> to vector<2x128xf32>
    %c0_6 = arith.constant 0 : index
    %c2 = arith.constant 2 : index
    %c0_7 = arith.constant 0 : index
    %c0_8 = arith.constant 0 : index
    %4 = vector.load %arg4[%c0_6, %c2, %c0_7, %c0_8] : memref<1x4x2x128xf32, #tpu.memory_space<vmem>>, vector<1x1x2x128xf32>
    %5 = vector.shape_cast %4 : vector<1x1x2x128xf32> to vector<2x128xf32>
    %c0_9 = arith.constant 0 : index
    %c3 = arith.constant 3 : index
    %c0_10 = arith.constant 0 : index
    %c0_11 = arith.constant 0 : index
    %6 = vector.load %arg4[%c0_9, %c3, %c0_10, %c0_11] : memref<1x4x2x128xf32, #tpu.memory_space<vmem>>, vector<1x1x2x128xf32>
    %7 = vector.shape_cast %6 : vector<1x1x2x128xf32> to vector<2x128xf32>
    %c0_12 = arith.constant 0 : index
    %8 = memref.load %arg3[%c0_12] : memref<4xf32, #tpu.memory_space<smem>>
    %9 = vector.broadcast %8 : f32 to vector<2x128xf32>
    %10 = arith.addf %1, %9 : vector<2x128xf32>
    %c0_13 = arith.constant 0 : index
    %11 = memref.load %arg2[%c0_13] : memref<16xf32, #tpu.memory_space<smem>>
    %12 = vector.broadcast %11 : f32 to vector<2x128xf32>
    %13 = arith.mulf %12, %1 : vector<2x128xf32>
    %14 = arith.addf %10, %13 : vector<2x128xf32>
    %c1_14 = arith.constant 1 : index
    %15 = memref.load %arg2[%c1_14] : memref<16xf32, #tpu.memory_space<smem>>
    %16 = vector.broadcast %15 : f32 to vector<2x128xf32>
    %17 = arith.mulf %16, %3 : vector<2x128xf32>
    %18 = arith.addf %14, %17 : vector<2x128xf32>
    %c2_15 = arith.constant 2 : index
    %19 = memref.load %arg2[%c2_15] : memref<16xf32, #tpu.memory_space<smem>>
    %20 = vector.broadcast %19 : f32 to vector<2x128xf32>
    %21 = arith.mulf %20, %5 : vector<2x128xf32>
    %22 = arith.addf %18, %21 : vector<2x128xf32>
    %c3_16 = arith.constant 3 : index
    %23 = memref.load %arg2[%c3_16] : memref<16xf32, #tpu.memory_space<smem>>
    %24 = vector.broadcast %23 : f32 to vector<2x128xf32>
    %25 = arith.mulf %24, %7 : vector<2x128xf32>
    %26 = arith.addf %22, %25 : vector<2x128xf32>
    %c0_17 = arith.constant 0 : index
    %c0_18 = arith.constant 0 : index
    %c0_19 = arith.constant 0 : index
    %c0_20 = arith.constant 0 : index
    %27 = vector.load %arg5[%c0_17, %c0_18, %c0_19, %c0_20] : memref<1x4x2x128xf32, #tpu.memory_space<vmem>>, vector<1x1x2x128xf32>
    %28 = vector.shape_cast %27 : vector<1x1x2x128xf32> to vector<2x128xf32>
    %29 = vector.shape_cast %26 : vector<2x128xf32> to vector<1x1x2x128xf32>
    tpu.vector_store %arg5[%c0_17, %c0_18, %c0_19, %c0_20], %29 {strides = array<i32>} : memref<1x4x2x128xf32, #tpu.memory_space<vmem>>, vector<1x1x2x128xf32>,
    %c1_21 = arith.constant 1 : index
    %30 = memref.load %arg3[%c1_21] : memref<4xf32, #tpu.memory_space<smem>>
    %31 = vector.broadcast %30 : f32 to vector<2x128xf32>
    %32 = arith.addf %3, %31 : vector<2x128xf32>
    %c4 = arith.constant 4 : index
    %33 = memref.load %arg2[%c4] : memref<16xf32, #tpu.memory_space<smem>>
    %34 = vector.broadcast %33 : f32 to vector<2x128xf32>
    %35 = arith.mulf %34, %1 : vector<2x128xf32>
    %36 = arith.addf %32, %35 : vector<2x128xf32>
    %c5 = arith.constant 5 : index
    %37 = memref.load %arg2[%c5] : memref<16xf32, #tpu.memory_space<smem>>
    %38 = vector.broadcast %37 : f32 to vector<2x128xf32>
    %39 = arith.mulf %38, %3 : vector<2x128xf32>
    %40 = arith.addf %36, %39 : vector<2x128xf32>
    %c6 = arith.constant 6 : index
    %41 = memref.load %arg2[%c6] : memref<16xf32, #tpu.memory_space<smem>>
    %42 = vector.broadcast %41 : f32 to vector<2x128xf32>
    %43 = arith.mulf %42, %5 : vector<2x128xf32>
    %44 = arith.addf %40, %43 : vector<2x128xf32>
    %c7 = arith.constant 7 : index
    %45 = memref.load %arg2[%c7] : memref<16xf32, #tpu.memory_space<smem>>
    %46 = vector.broadcast %45 : f32 to vector<2x128xf32>
    %47 = arith.mulf %46, %7 : vector<2x128xf32>
    %48 = arith.addf %44, %47 : vector<2x128xf32>
    %c0_22 = arith.constant 0 : index
    %c1_23 = arith.constant 1 : index
    %c0_24 = arith.constant 0 : index
    %c0_25 = arith.constant 0 : index
    %49 = vector.load %arg5[%c0_22, %c1_23, %c0_24, %c0_25] : memref<1x4x2x128xf32, #tpu.memory_space<vmem>>, vector<1x1x2x128xf32>
    %50 = vector.shape_cast %49 : vector<1x1x2x128xf32> to vector<2x128xf32>
    %51 = vector.shape_cast %48 : vector<2x128xf32> to vector<1x1x2x128xf32>
    tpu.vector_store %arg5[%c0_22, %c1_23, %c0_24, %c0_25], %51 {strides = array<i32>} : memref<1x4x2x128xf32, #tpu.memory_space<vmem>>, vector<1x1x2x128xf32>,
    %c2_26 = arith.constant 2 : index
    %52 = memref.load %arg3[%c2_26] : memref<4xf32, #tpu.memory_space<smem>>
    %53 = vector.broadcast %52 : f32 to vector<2x128xf32>
    %54 = arith.addf %5, %53 : vector<2x128xf32>
    %c8 = arith.constant 8 : index
    %55 = memref.load %arg2[%c8] : memref<16xf32, #tpu.memory_space<smem>>
    %56 = vector.broadcast %55 : f32 to vector<2x128xf32>
    %57 = arith.mulf %56, %1 : vector<2x128xf32>
    %58 = arith.addf %54, %57 : vector<2x128xf32>
    %c9 = arith.constant 9 : index
    %59 = memref.load %arg2[%c9] : memref<16xf32, #tpu.memory_space<smem>>
    %60 = vector.broadcast %59 : f32 to vector<2x128xf32>
    %61 = arith.mulf %60, %3 : vector<2x128xf32>
    %62 = arith.addf %58, %61 : vector<2x128xf32>
    %c10 = arith.constant 10 : index
    %63 = memref.load %arg2[%c10] : memref<16xf32, #tpu.memory_space<smem>>
    %64 = vector.broadcast %63 : f32 to vector<2x128xf32>
    %65 = arith.mulf %64, %5 : vector<2x128xf32>
    %66 = arith.addf %62, %65 : vector<2x128xf32>
    %c11 = arith.constant 11 : index
    %67 = memref.load %arg2[%c11] : memref<16xf32, #tpu.memory_space<smem>>
    %68 = vector.broadcast %67 : f32 to vector<2x128xf32>
    %69 = arith.mulf %68, %7 : vector<2x128xf32>
    %70 = arith.addf %66, %69 : vector<2x128xf32>
    %c0_27 = arith.constant 0 : index
    %c2_28 = arith.constant 2 : index
    %c0_29 = arith.constant 0 : index
    %c0_30 = arith.constant 0 : index
    %71 = vector.load %arg5[%c0_27, %c2_28, %c0_29, %c0_30] : memref<1x4x2x128xf32, #tpu.memory_space<vmem>>, vector<1x1x2x128xf32>
    %72 = vector.shape_cast %71 : vector<1x1x2x128xf32> to vector<2x128xf32>
    %73 = vector.shape_cast %70 : vector<2x128xf32> to vector<1x1x2x128xf32>
    tpu.vector_store %arg5[%c0_27, %c2_28, %c0_29, %c0_30], %73 {strides = array<i32>} : memref<1x4x2x128xf32, #tpu.memory_space<vmem>>, vector<1x1x2x128xf32>,
    %c3_31 = arith.constant 3 : index
    %74 = memref.load %arg3[%c3_31] : memref<4xf32, #tpu.memory_space<smem>>
    %75 = vector.broadcast %74 : f32 to vector<2x128xf32>
    %76 = arith.addf %7, %75 : vector<2x128xf32>
    %c12 = arith.constant 12 : index
    %77 = memref.load %arg2[%c12] : memref<16xf32, #tpu.memory_space<smem>>
    %78 = vector.broadcast %77 : f32 to vector<2x128xf32>
    %79 = arith.mulf %78, %1 : vector<2x128xf32>
    %80 = arith.addf %76, %79 : vector<2x128xf32>
    %c13 = arith.constant 13 : index
    %81 = memref.load %arg2[%c13] : memref<16xf32, #tpu.memory_space<smem>>
    %82 = vector.broadcast %81 : f32 to vector<2x128xf32>
    %83 = arith.mulf %82, %3 : vector<2x128xf32>
    %84 = arith.addf %80, %83 : vector<2x128xf32>
    %c14 = arith.constant 14 : index
    %85 = memref.load %arg2[%c14] : memref<16xf32, #tpu.memory_space<smem>>
    %86 = vector.broadcast %85 : f32 to vector<2x128xf32>
    %87 = arith.mulf %86, %5 : vector<2x128xf32>
    %88 = arith.addf %84, %87 : vector<2x128xf32>
    %c15 = arith.constant 15 : index
    %89 = memref.load %arg2[%c15] : memref<16xf32, #tpu.memory_space<smem>>
    %90 = vector.broadcast %89 : f32 to vector<2x128xf32>
    %91 = arith.mulf %90, %7 : vector<2x128xf32>
    %92 = arith.addf %88, %91 : vector<2x128xf32>
    %c0_32 = arith.constant 0 : index
    %c3_33 = arith.constant 3 : index
    %c0_34 = arith.constant 0 : index
    %c0_35 = arith.constant 0 : index
    %93 = vector.load %arg5[%c0_32, %c3_33, %c0_34, %c0_35] : memref<1x4x2x128xf32, #tpu.memory_space<vmem>>, vector<1x1x2x128xf32>
    %94 = vector.shape_cast %93 : vector<1x1x2x128xf32> to vector<2x128xf32>
    %95 = vector.shape_cast %92 : vector<2x128xf32> to vector<1x1x2x128xf32>
    tpu.vector_store %arg5[%c0_32, %c3_33, %c0_34, %c0_35], %95 {strides = array<i32>} : memref<1x4x2x128xf32, #tpu.memory_space<vmem>>, vector<1x1x2x128xf32>,
    return
  }
  func.func @transform_0(%arg0: i32, %arg1: i32) -> i32 {
    %c0_i32 = arith.constant 0 : i32
    %c0_i32_0 = arith.constant 0 : i32
    return %c0_i32 : i32
  }
  func.func @transform_1(%arg0: i32, %arg1: i32) -> i32 {
    %c0_i32 = arith.constant 0 : i32
    %c0_i32_0 = arith.constant 0 : i32
    return %c0_i32 : i32
  }
  func.func @transform_2(%arg0: i32, %arg1: i32) -> (i32, i32, i32, i32) {
    %c0_i32 = arith.constant 0 : i32
    %c0_i32_0 = arith.constant 0 : i32
    %c0_i32_1 = arith.constant 0 : i32
    return %arg0, %c0_i32, %arg1, %c0_i32_0 : i32, i32, i32, i32
  }
  func.func @transform_3(%arg0: i32, %arg1: i32) -> (i32, i32, i32, i32) {
    %c0_i32 = arith.constant 0 : i32
    %c0_i32_0 = arith.constant 0 : i32
    %c0_i32_1 = arith.constant 0 : i32
    return %arg0, %c0_i32, %arg1, %c0_i32_0 : i32, i32, i32, i32
  }
}

</mosaic_0001>

<llo_original>
// kernel: tpu_custom_call.1
$region0: #{tpu_custom_call.1}
  #allocation0 [shape = 'u32[]', space=smem, size = 0x4, offset = 0x4, fixed_abs, tag = 'smem constant byte address 0x4 - core index']
  #allocation1 [shape = 'u32[144,128]{1,0:T(1,128)}', space=vmem, size = 0x12000, scoped, tag = 'internal scratch']
  %s0 = inlined_call_operand.hbm [shape: f32[16], index: 0, kind: input, shape index: {}]
  %s1 = inlined_call_operand.vmem [shape: f32[4], index: 1, kind: input, shape index: {}]
  %s2 = inlined_call_operand.hbm [shape: f32[2,4,2,128], index: 2, kind: input, shape index: {}]
  %s3 = inlined_call_operand.hbm [shape: f32[2,4,2,128], index: 3, kind: output, shape index: {}]
  %s4 = sld [smem:[#allocation0]]
  $region57: #{tpu_custom_call.1} parent=0
    _
  %s6 = ssub.s32 1, %s4
  %s7 = scalar_select 0, %s6, %s4
  $region1: #{tpu_custom_call.1} parent=0
    #allocation2 [shape = 'u8[512]{0}', space=smem, size = 0x200, scoped, tag = 'input window, operand 0, single buffered']
    #allocation3 [shape = 's32[2]{0}', space=sflag, size = 0x8, scoped, tag = 'scoped memory for tpu_custom_call.1']
    #allocation4 [shape = 's32[2]{0}', space=sflag, size = 0x8, scoped, tag = 'scoped memory for tpu_custom_call.1']
    #allocation5 [shape = 's32[2]{0}', space=sflag, size = 0x8, scoped, tag = 'scoped memory for tpu_custom_call.1']
    #allocation6 [shape = 's32[2]{0}', space=sflag, size = 0x8, scoped, tag = 'scoped memory for tpu_custom_call.1']
    #allocation7 [shape = 'u8[512]{0}', space=smem, size = 0x200, scoped, tag = 'input window, operand 1, single buffered']
    #allocation8 [shape = 'u8[8192]{0}', space=vmem, size = 0x2000, scoped, tag = 'input window, operand 2']
    #allocation9 [shape = 'u8[8192]{0}', space=vmem, size = 0x2000, scoped, tag = 'output window, operand 0']
    %8 = vsyncpa [#allocation5], 0
    %9 = vsyncpa [#allocation6], 0
    %10 = vsyncpa [#allocation3], 0
    %s11 = scalar_lea.sflag [#allocation3], 1
    %12 = vsyncpa %s11, 0
    %13 = vsyncpa [#allocation4], 0
    %s14 = scalar_lea.sflag [#allocation4], 1
    %15 = vsyncpa %s14, 0
    loop: start=0, step=1, limit=4
    $region2: #{tpu_custom_call.1} parent=1 // loop_pre_header
      _
    $region3: #{tpu_custom_call.1} parent=1 // loop_header
      %s17 = sphi 0, %s21
      %p18 = scmp.ge.s32.totalorder %s17, 4
      %s24 = sphi 0, %s36
      %s25 = sphi 0, %s32
      %s26 = sphi 0, %s24
      %s27 = sphi 0, %s25
      %s28 = sphi 0, %s26
      %s29 = sphi 0, %s27
      %s37 = sphi 0, %s37
      %s39 = sphi 0, %s37
      %s40 = sphi 0, %s39
      %s54 = sphi 0, %s40
      %s58 = sphi 0, %s58
      %s60 = sphi 0, %s58
      %s61 = sphi 0, %s60
      %s75 = sphi 0, %s61
      %s83 = sphi 0, %s85
      %s86 = sphi 0, %s83
      %s87 = sphi 0, %s86
      %s103 = sphi 0, %s87
      %s111 = sphi 0, %s113
      %s114 = sphi 0, %s111
      %s115 = sphi 0, %s114
      %s131 = sphi 0, %s115
    $region4: #{tpu_custom_call.1} parent=1 // loop_header_branch
      %20 = sbr.rel (%p18) target = $region8
    $region5: #{tpu_custom_call.1} parent=1 // loop_body
      %s22 = ssub.s32 %s17, 1
      %s23 = ssub.s32 %s17, 2
      %s30 = sadd.s32 1, %s25
      %p31 = scmp.ge.s32.totalorder %s30, 1
      %s32 = scalar_select %p31, 0, %s30
      %s33 = sadd.s32 1, %s24
      %s34 = scalar_select %p31, %s33, %s24
      %p35 = scmp.ge.s32.totalorder %s34, 2
      %s36 = scalar_select %p35, 0, %s34
      %s38 = sadd.s32 %s37, 1
      %p41 = scmp.eq.s32.totalorder %s17, 1
      %p42 = scmp.ne.s32.totalorder %s37, %s39
      %p43 = scmp.eq.s32.totalorder %s17, 0
      %p44 = por %p42, %p43
      %p45 = scmp.ne.s32.totalorder %s37, %s39
      %p46 = scmp.eq.s32.totalorder %s22, 1
      %p47 = por %p45, %p46
      %p48 = scmp.ne.s32.totalorder %s39, %s40
      %p49 = scmp.eq.s32.totalorder %s22, 0
      %p50 = por %p48, %p49
      %p51 = scmp.ne.s32.totalorder %s39, %s40
      %p52 = scmp.eq.s32.totalorder %s23, 1
      %p53 = por %p51, %p52
      %p55 = scmp.ne.s32.totalorder %s40, %s54
      %p56 = scmp.eq.s32.totalorder %s23, 0
      %p57 = por %p55, %p56
      %s59 = sadd.s32 %s58, 1
      %p62 = scmp.eq.s32.totalorder %s17, 1
      %p63 = scmp.ne.s32.totalorder %s58, %s60
      %p64 = scmp.eq.s32.totalorder %s17, 0
      %p65 = por %p63, %p64
      %p66 = scmp.ne.s32.totalorder %s58, %s60
      %p67 = scmp.eq.s32.totalorder %s22, 1
      %p68 = por %p66, %p67
      %p69 = scmp.ne.s32.totalorder %s60, %s61
      %p70 = scmp.eq.s32.totalorder %s22, 0
      %p71 = por %p69, %p70
      %p72 = scmp.ne.s32.totalorder %s60, %s61
      %p73 = scmp.eq.s32.totalorder %s23, 1
      %p74 = por %p72, %p73
      %p76 = scmp.ne.s32.totalorder %s61, %s75
      %p77 = scmp.eq.s32.totalorder %s23, 0
      %p78 = por %p76, %p77
      %s79 = ssub.s32 %s24, %s36
      %s80 = ssub.s32 %s25, %s32
      %s81 = sor.u32 %s79, %s80
      %p82 = scmp.eq.s32.totalorder %s81, 0
      %s84 = sadd.s32 %s83, 1
      %s85 = scalar_select %p82, %s83, %s84
      %p88 = pneg %p82
      %p89 = scmp.eq.s32.totalorder %s17, 1
      %p90 = por %p88, %p89
      %p91 = scmp.ne.s32.totalorder %s83, %s86
      %p92 = scmp.eq.s32.totalorder %s17, 0
      %p93 = por %p91, %p92
      %p94 = scmp.ne.s32.totalorder %s83, %s86
      %p95 = scmp.eq.s32.totalorder %s22, 1
      %p96 = por %p94, %p95
      %p97 = scmp.ne.s32.totalorder %s86, %s87
      %p98 = scmp.eq.s32.totalorder %s22, 0
      %p99 = por %p97, %p98
      %p100 = scmp.ne.s32.totalorder %s86, %s87
      %p101 = scmp.eq.s32.totalorder %s23, 1
      %p102 = por %p100, %p101
      %p104 = scmp.ne.s32.totalorder %s87, %s103
      %p105 = scmp.eq.s32.totalorder %s23, 0
      %p106 = por %p104, %p105
      %s107 = ssub.s32 %s24, %s36
      %s108 = ssub.s32 %s25, %s32
      %s109 = sor.u32 %s107, %s108
      %p110 = scmp.eq.s32.totalorder %s109, 0
      %s112 = sadd.s32 %s111, 1
      %s113 = scalar_select %p110, %s111, %s112
      %p116 = pneg %p110
      %p117 = scmp.eq.s32.totalorder %s17, 1
      %p118 = por %p116, %p117
      %p119 = scmp.ne.s32.totalorder %s111, %s114
      %p120 = scmp.eq.s32.totalorder %s17, 0
      %p121 = por %p119, %p120
      %p122 = scmp.ne.s32.totalorder %s111, %s114
      %p123 = scmp.eq.s32.totalorder %s22, 1
      %p124 = por %p122, %p123
      %p125 = scmp.ne.s32.totalorder %s114, %s115
      %p126 = scmp.eq.s32.totalorder %s22, 0
      %p127 = por %p125, %p126
      %p128 = scmp.ne.s32.totalorder %s114, %s115
      %p129 = scmp.eq.s32.totalorder %s23, 1
      %p130 = por %p128, %p129
      %p132 = scmp.ne.s32.totalorder %s115, %s131
      %p133 = scmp.eq.s32.totalorder %s23, 0
      %p134 = por %p132, %p133
      %p135 = scmp.le.s32.totalorder 1, %s17
      %p136 = scmp.lt.s32.totalorder %s17, 3
      %p137 = pnand %p135, %p136
      %p138 = pneg %p137
      // Predicated region
      $region9: #{tpu_custom_call.1} parent=5 // pred_check
        _
      $region10: #{tpu_custom_call.1} parent=5 // pred_check_branch
        %140 = sbr.rel (%p137) target = $region12
      $region11: #{tpu_custom_call.1} parent=5 // pred_region
        %s141 = ssub.s32 %s17, 1
        // Predicated region
        $region13: #{tpu_custom_call.1} parent=11 // pred_check
          %p142 = pneg %p50
        $region14: #{tpu_custom_call.1} parent=11 // pred_check_branch
          %144 = sbr.rel (%p142) target = $region16
        $region15: #{tpu_custom_call.1} parent=11 // pred_region
          %s146 = ssub.s32 16, 16
          %147 = vsyncadd [#allocation5], %s146
          %150 = dma.hbm_to_smem %s0, 16, [#allocation2], [#allocation5]
        $region16: #{tpu_custom_call.1} parent=11 // pred_fallthru
          _
        // Predicated region
        $region17: #{tpu_custom_call.1} parent=11 // pred_check
          %p151 = pneg %p71
        $region18: #{tpu_custom_call.1} parent=11 // pred_check_branch
          %153 = sbr.rel (%p151) target = $region20
        $region19: #{tpu_custom_call.1} parent=11 // pred_region
          %s155 = ssub.s32 16, 16
          %156 = vsyncadd [#allocation6], %s155
          %s158 = sshll.u32 %s1, 4
          %s159 = int_to_ptr.vmem [resolvable:$true] %s158
          %161 = dma.vmem_to_smem %s159, 16, [#allocation7], [#allocation6]
        $region20: #{tpu_custom_call.1} parent=11 // pred_fallthru
          _
      $region12: #{tpu_custom_call.1} parent=5 // pred_fallthru
        _
      %p162 = scmp.lt.s32.totalorder %s17, 2
      // Predicated region
      $region21: #{tpu_custom_call.1} parent=5 // pred_check
        %p163 = pneg %p162
      $region22: #{tpu_custom_call.1} parent=5 // pred_check_branch
        %165 = sbr.rel (%p163) target = $region24
      $region23: #{tpu_custom_call.1} parent=5 // pred_region
        // Predicated region
        $region25: #{tpu_custom_call.1} parent=23 // pred_check
          %p166 = pneg %p93
        $region26: #{tpu_custom_call.1} parent=23 // pred_check_branch
          %168 = sbr.rel (%p166) target = $region28
        $region27: #{tpu_custom_call.1} parent=23 // pred_region
          %s169 = sand.u32 %s83, 1
          %s170 = scalar_lea.sflag [#allocation3], %s169
          %s171 = sand.u32 %s83, 1
          %s172 = smul.addr %s171, 8
          %s173 = scalar_lea.vmem [#allocation8], %s172
          %s175 = ssub.s32 128, 128
          %176 = vsyncadd %s170, %s175
          %s177 = smul.addr %s24, 4
          %s178 = sadd.s32 %s25, %s177
          %s179 = smul.addr %s178, 32
          %s180 = scalar_lea.hbm %s2, %s179
          %s181 = sshll.u32 %s173, 4
          %s182 = int_to_ptr.vmem [resolvable:$true] %s181
          %187 = dma.hbm_to_vmem [thread:$0]  %s180, 128, %s182, %s170, 32, 32, 2
        $region28: #{tpu_custom_call.1} parent=23 // pred_fallthru
          _
      $region24: #{tpu_custom_call.1} parent=5 // pred_fallthru
        _
      %p188 = scmp.le.s32.totalorder 1, %s17
      %p189 = scmp.lt.s32.totalorder %s17, 3
      %p190 = pnand %p188, %p189
      %p191 = pneg %p190
      // Predicated region
      $region29: #{tpu_custom_call.1} parent=5 // pred_check
        _
      $region30: #{tpu_custom_call.1} parent=5 // pred_check_branch
        %193 = sbr.rel (%p190) target = $region32
      $region31: #{tpu_custom_call.1} parent=5 // pred_region
        %s194 = ssub.s32 %s17, 1
        // Predicated region
        $region33: #{tpu_custom_call.1} parent=31 // pred_check
          %p195 = pneg %p50
        $region34: #{tpu_custom_call.1} parent=31 // pred_check_branch
          %197 = sbr.rel (%p195) target = $region36
        $region35: #{tpu_custom_call.1} parent=31 // pred_region
          %198 = dma.done [#allocation5], 16
        $region36: #{tpu_custom_call.1} parent=31 // pred_fallthru
          _
        // Predicated region
        $region37: #{tpu_custom_call.1} parent=31 // pred_check
          %p199 = pneg %p71
        $region38: #{tpu_custom_call.1} parent=31 // pred_check_branch
          %201 = sbr.rel (%p199) target = $region40
        $region39: #{tpu_custom_call.1} parent=31 // pred_region
          %202 = dma.done [#allocation6], 16
        $region40: #{tpu_custom_call.1} parent=31 // pred_fallthru
          _
        %s203 = sand.u32 %s86, 1
        %s204 = scalar_lea.sflag [#allocation3], %s203
        %s205 = sand.u32 %s86, 1
        %s206 = smul.addr %s205, 8
        %s207 = scalar_lea.vmem [#allocation8], %s206
        // Predicated region
        $region41: #{tpu_custom_call.1} parent=31 // pred_check
          %p208 = pneg %p99
        $region42: #{tpu_custom_call.1} parent=31 // pred_check_branch
          %210 = sbr.rel (%p208) target = $region44
        $region43: #{tpu_custom_call.1} parent=31 // pred_region
          %211 = dma.done %s204, 128
        $region44: #{tpu_custom_call.1} parent=31 // pred_fallthru
          _
        %212 = sfence
        %p213 = pneg %p50
        %p214 = pneg %p47
        %p215 = pneg %p71
        %p216 = pneg %p68
        %s217 = sand.u32 %s86, 1
        %s218 = scalar_lea.sflag [#allocation3], %s217
        %s219 = sand.u32 %s86, 1
        %s220 = smul.addr %s219, 8
        %s221 = scalar_lea.vmem [#allocation8], %s220
        %p222 = pneg %p99
        %p223 = pneg %p96
        %p224 = pneg %p127
        %p225 = pneg %p124
        %s226 = sand.u32 %s114, 1
        %s227 = scalar_lea.sflag [#allocation4], %s226
        %s228 = sand.u32 %s114, 1
        %s229 = smul.addr %s228, 8
        %s230 = scalar_lea.vmem [#allocation9], %s229
        %v231 = vld [vmem:[%s207] sm:$0x3]
        %s232 = scalar_lea.vmem %s207, 2 [#allocation8]
        %v233 = vld [vmem:[%s232] sm:$0x3]
        %s234 = scalar_lea.vmem %s207, 4 [#allocation8]
        %v235 = vld [vmem:[%s234] sm:$0x3]
        %s236 = scalar_lea.vmem %s207, 6 [#allocation8]
        %v237 = vld [vmem:[%s236] sm:$0x3]
        %s238 = sld [smem:[#allocation7]]
        %v239 = vstv %s238
        %v240 = vadd.f32 %v231, %v239
        %s241 = sld [smem:[#allocation2]]
        %v242 = vstv %s241
        %v243 = vmul.f32 %v242, %v231
        %v244 = vadd.f32 %v240, %v243
        %s245 = sld [smem:[#allocation2 + $0x1]]
        %v246 = vstv %s245
        %v247 = vmul.f32 %v246, %v233
        %v248 = vadd.f32 %v244, %v247
        %s249 = sld [smem:[#allocation2 + $0x2]]
        %v250 = vstv %s249
        %v251 = vmul.f32 %v250, %v235
        %v252 = vadd.f32 %v248, %v251
        %s253 = sld [smem:[#allocation2 + $0x3]]
        %v254 = vstv %s253
        %v255 = vmul.f32 %v254, %v237
        %v256 = vadd.f32 %v252, %v255
        %257 = vst [vmem:[%s230] sm:$0x3] %v256
        %s258 = sld [smem:[#allocation7 + $0x1]]
        %v259 = vstv %s258
        %v260 = vadd.f32 %v233, %v259
        %s261 = sld [smem:[#allocation2 + $0x4]]
        %v262 = vstv %s261
        %v263 = vmul.f32 %v262, %v231
        %v264 = vadd.f32 %v260, %v263
        %s265 = sld [smem:[#allocation2 + $0x5]]
        %v266 = vstv %s265
        %v267 = vmul.f32 %v266, %v233
        %v268 = vadd.f32 %v264, %v267
        %s269 = sld [smem:[#allocation2 + $0x6]]
        %v270 = vstv %s269
        %v271 = vmul.f32 %v270, %v235
        %v272 = vadd.f32 %v268, %v271
        %s273 = sld [smem:[#allocation2 + $0x7]]
        %v274 = vstv %s273
        %v275 = vmul.f32 %v274, %v237
        %v276 = vadd.f32 %v272, %v275
        %s277 = scalar_lea.vmem %s230, 2 [#allocation9]
        %278 = vst [vmem:[%s277] sm:$0x3] %v276
        %s279 = sld [smem:[#allocation7 + $0x2]]
        %v280 = vstv %s279
        %v281 = vadd.f32 %v235, %v280
        %s282 = sld [smem:[#allocation2 + $0x8]]
        %v283 = vstv %s282
        %v284 = vmul.f32 %v283, %v231
        %v285 = vadd.f32 %v281, %v284
        %s286 = sld [smem:[#allocation2 + $0x9]]
        %v287 = vstv %s286
        %v288 = vmul.f32 %v287, %v233
        %v289 = vadd.f32 %v285, %v288
        %s290 = sld [smem:[#allocation2 + $0xa]]
        %v291 = vstv %s290
        %v292 = vmul.f32 %v291, %v235
        %v293 = vadd.f32 %v289, %v292
        %s294 = sld [smem:[#allocation2 + $0xb]]
        %v295 = vstv %s294
        %v296 = vmul.f32 %v295, %v237
        %v297 = vadd.f32 %v293, %v296
        %s298 = scalar_lea.vmem %s230, 4 [#allocation9]
        %299 = vst [vmem:[%s298] sm:$0x3] %v297
        %s300 = sld [smem:[#allocation7 + $0x3]]
        %v301 = vstv %s300
        %v302 = vadd.f32 %v237, %v301
        %s303 = sld [smem:[#allocation2 + $0xc]]
        %v304 = vstv %s303
        %v305 = vmul.f32 %v304, %v231
        %v306 = vadd.f32 %v302, %v305
        %s307 = sld [smem:[#allocation2 + $0xd]]
        %v308 = vstv %s307
        %v309 = vmul.f32 %v308, %v233
        %v310 = vadd.f32 %v306, %v309
        %s311 = sld [smem:[#allocation2 + $0xe]]
        %v312 = vstv %s311
        %v313 = vmul.f32 %v312, %v235
        %v314 = vadd.f32 %v310, %v313
        %s315 = sld [smem:[#allocation2 + $0xf]]
        %v316 = vstv %s315
        %v317 = vmul.f32 %v316, %v237
        %v318 = vadd.f32 %v314, %v317
        %s319 = scalar_lea.vmem %s230, 6 [#allocation9]
        %320 = vst [vmem:[%s319] sm:$0x3] %v318
        %s321 = sand.u32 %s114, 1
        %s322 = scalar_lea.sflag [#allocation4], %s321
        %s323 = sand.u32 %s114, 1
        %s324 = smul.addr %s323, 8
        %s325 = scalar_lea.vmem [#allocation9], %s324
        // Predicated region
        $region45: #{tpu_custom_call.1} parent=31 // pred_check
          %p326 = pneg %p124
        $region46: #{tpu_custom_call.1} parent=31 // pred_check_branch
          %328 = sbr.rel (%p326) target = $region48
        $region47: #{tpu_custom_call.1} parent=31 // pred_region
          %s330 = ssub.s32 128, 128
          %331 = vsyncadd %s322, %s330
          %s332 = smul.addr %s26, 4
          %s333 = sadd.s32 %s27, %s332
          %s334 = smul.addr %s333, 32
          %s335 = scalar_lea.hbm %s3, %s334
          %s336 = sshll.u32 %s325, 4
          %s337 = int_to_ptr.vmem [resolvable:$true] %s336
          %342 = dma.vmem_to_hbm [thread:$0]  %s337, 128, %s335, %s322, 32, 32, 2
        $region48: #{tpu_custom_call.1} parent=31 // pred_fallthru
          _
      $region32: #{tpu_custom_call.1} parent=5 // pred_fallthru
        _
      %p343 = scmp.le.s32.totalorder 2, %s17
      // Predicated region
      $region49: #{tpu_custom_call.1} parent=5 // pred_check
        %p344 = pneg %p343
      $region50: #{tpu_custom_call.1} parent=5 // pred_check_branch
        %346 = sbr.rel (%p344) target = $region52
      $region51: #{tpu_custom_call.1} parent=5 // pred_region
        %s347 = ssub.s32 %s17, 2
        // Predicated region
        $region53: #{tpu_custom_call.1} parent=51 // pred_check
          %p348 = pneg %p130
        $region54: #{tpu_custom_call.1} parent=51 // pred_check_branch
          %350 = sbr.rel (%p348) target = $region56
        $region55: #{tpu_custom_call.1} parent=51 // pred_region
          %s351 = sand.u32 %s115, 1
          %s352 = scalar_lea.sflag [#allocation4], %s351
          %s353 = sand.u32 %s115, 1
          %s354 = smul.addr %s353, 8
          %s355 = scalar_lea.vmem [#allocation9], %s354
          %356 = dma.done %s352, 128
        $region56: #{tpu_custom_call.1} parent=51 // pred_fallthru
          _
      $region52: #{tpu_custom_call.1} parent=5 // pred_fallthru
        _
    $region6: #{tpu_custom_call.1} parent=1 // loop_footer
      %s21 = sadd.s32 1, %s17
    $region7: #{tpu_custom_call.1} parent=1 // loop_footer_branch
      %16 = sbr.rel target = $region3
    $region8: #{tpu_custom_call.1} parent=1 // loop_exit
      _
    %357 = vsyncpa [#allocation3], 1
    %s358 = scalar_lea.sflag [#allocation3], 1
    %359 = vsyncpa %s358, 1
    %360 = vsyncpa [#allocation4], 1
    %s361 = scalar_lea.sflag [#allocation4], 1
    %362 = vsyncpa %s361, 1
    %363 = vsyncpa [#allocation5], 1
    %s364 = scalar_lea.sflag [#allocation5], 1
    %365 = vsyncpa %s364, 1
    %366 = vsyncpa [#allocation6], 1
    %s367 = scalar_lea.sflag [#allocation6], 1
    %368 = vsyncpa %s367, 1

</llo_original>
